<compile_context>
chip_gen: v6e
topology: v6e:2x2x1
jax: 0.10.0
libtpu: 0.0.40
codegen_flags: <defaults>
</compile_context>

<pallas_src>
import functools

import jax
import jax.numpy as jnp
import numpy as np
from jax.experimental import pallas as pl
from jax.experimental.pallas import tpu as pltpu

_LANE = 128
_VMEM_BUDGET = 20 * 1024 * 1024        # per-step working-set target (all of v5e/v6e/v7x)
_VMEM_SOFT_DEFAULT = 12 * 1024 * 1024  # only raise vmem_limit_bytes above this
_IM2COL_MAX_DEPTH = 256                # single im2col dot only for shallow K*C_in


def _round_up(a, b):
    return (a + b - 1) // b * b


def _conv_vmem_bytes(C_in, C_out, K, l_tile, in_b, out_b, use_im2col, apply_norm):
    """Rough per-step VMEM working set of the conv kernel (bytes)."""
    halo_w = max(K - 1, 1)
    n = 2 * C_in * l_tile * in_b             # x tile (double-buffered)
    n += 2 * C_out * l_tile * out_b          # out tile (double-buffered)
    if K > 1:
        n += 2 * C_in * halo_w * in_b        # halo sidecar tile
    n += 2 * K * C_in * C_out * in_b         # grid-constant weight (pipeline buffers)
    n += 2 * C_out * 4                       # bias
    n += C_out * l_tile * 4                  # f32 accumulator temporary
    if K > 1 and use_im2col:
        n += (K + 1) * C_in * l_tile * in_b  # x_win + xcol temporaries
    elif K > 1:
        n += C_in * (l_tile + _LANE) * in_b  # lane-padded window scratch
    if apply_norm:
        n += 4 * C_out * 2 * 4               # per-tile stats blocks
    return n


def _vmem_limit_bytes(need):
    # Only override the scoped-VMEM default when the working set needs it (keeps small
    # problems portable across chips); cap below v7x's 64 MiB physical VMEM.
    if need <= _VMEM_SOFT_DEFAULT:
        return None
    return int(min(max(2 * need, 32 * 1024 * 1024), 64 * 1024 * 1024))


def _conv1d_kernel(*refs, K, l_tile, halo_w, tail_len, use_im2col, apply_norm, has_win):
    """One (batch n, L tile l) grid step.

    refs (in order): x (1, C_in, l_tile), [halo (1, 1, C_in, K-1) if K > 1],
                     w, bias (C_out, 1), out (1, C_out, l_tile),
                     [stats (1, 1, C_out, 2) if time_group_norm],
                     [window scratch (C_in, l_tile + 128) if K-dots path].
    """
    it = iter(refs)
    x_ref = next(it)
    halo_ref = next(it) if K > 1 else None
    w_ref = next(it)
    b_ref = next(it)
    o_ref = next(it)
    stats_ref = next(it) if apply_norm else None
    win_ref = next(it) if has_win else None

    x_cur = x_ref[0]                                     # (C_in, l_tile), compute dtype

    if K == 1:
        acc = jnp.dot(w_ref[...], x_cur, preferred_element_type=jnp.float32)
    elif use_im2col:
        # Shallow contraction (small K*C_in): fold the K taps into ONE MXU dot.
        x_win = jnp.concatenate([x_cur, halo_ref[0, 0]], axis=1)   # (C_in, l_tile+K-1)
        xcol = jnp.concatenate([x_win[:, k:k + l_tile] for k in range(K)], axis=0)
        acc = jnp.dot(w_ref[...], xcol, preferred_element_type=jnp.float32)
    else:
        # Deep contraction: K accumulating dots over a lane-padded window scratch.
        # Avoids materializing a (K*C_in, l_tile) im2col temp (VMEM + store traffic).
        win_ref[:, :l_tile] = x_cur
        win_ref[:, l_tile:l_tile + halo_w] = halo_ref[0, 0]
        acc = jnp.dot(w_ref[0], win_ref[:, :l_tile], preferred_element_type=jnp.float32)
        for k in range(1, K):
            acc = acc + jnp.dot(w_ref[k], win_ref[:, k:k + l_tile],
                                preferred_element_type=jnp.float32)

    acc = acc + b_ref[...]                               # f32 bias broadcast
    o_ref[0] = acc.astype(o_ref.dtype)

    if apply_norm:
        # Per-tile partial [sum, sumsq]; reduced across tiles in JAX afterwards.
        # Keeping stats per-tile keeps the L grid axis 'parallel' (v7x megacore).
        def _write_stats(y):
            s = jnp.sum(y, axis=1, keepdims=True)
            q = jnp.sum(y * y, axis=1, keepdims=True)
            stats_ref[0, 0] = jnp.concatenate([s, q], axis=1)

        if tail_len == l_tile:
            _write_stats(acc)                            # no lane padding anywhere
        else:
            l = pl.program_id(1)
            last = pl.num_programs(1) - 1

            @pl.when(l != last)
            def _():
                _write_stats(acc)

            @pl.when(l == last)
            def _():
                col = jax.lax.broadcasted_iota(jnp.int32, acc.shape, 1)
                _write_stats(jnp.where(col < tail_len, acc, 0.0))


def _affine_kernel(y_ref, a_ref, b_ref, o_ref):
    # GroupNorm finalize: y * a + b with per-(sample, channel) scale/shift, lane-dense.
    o_ref[0] = (y_ref[0] * a_ref[0] + b_ref[0]).astype(o_ref.dtype)


def weight_norm_reparam(v, g):
    # torch.nn.utils.weight_norm with dim=0: w = g * v / ||v||_(per out-channel)
    norm = jnp.sqrt(jnp.sum(v * v, axis=(1, 2), keepdims=True))
    return g * v / norm


def norm_conv1d(x, weight, bias, gamma=None, beta=None, *, norm='weight_norm',
                groups=1, eps=1e-5, l_tile=None, compute_dtype=jnp.bfloat16):
    """Pallas implementation of NormConv1d.forward (Conv1d + norm)."""
    N, C_in, L = x.shape
    C_out, _, K = weight.shape
    L_out = L - K + 1
    assert L_out >= 1
    apply_norm = norm == 'time_group_norm'

    in_b = jnp.dtype(compute_dtype).itemsize
    out_dtype = x.dtype
    # bf16 intermediate halves the group-norm finalize pass's extra HBM round-trip.
    inter_dtype = compute_dtype if apply_norm else out_dtype
    inter_b = jnp.dtype(inter_dtype).itemsize
    out_b = jnp.dtype(out_dtype).itemsize

    use_im2col = K > 1 and (K * C_in) < _IM2COL_MAX_DEPTH
    has_win = K > 1 and not use_im2col

    # --- channel-aware L tiling: biggest lane-dense 128-multiple tile whose per-step
    # working set fits comfortably in scoped VMEM on v5e/v6e/v7x. ---
    if l_tile is None:
        l_tile = min(1024, _round_up(L_out, _LANE))
        while l_tile > _LANE and _conv_vmem_bytes(
                C_in, C_out, K, l_tile, in_b, inter_b, use_im2col,
                apply_norm) > _VMEM_BUDGET:
            l_tile = max(_LANE, _round_up(l_tile // 2, _LANE))
    else:
        l_tile = _round_up(l_tile, _LANE)

    n_l = -(-L_out // l_tile)
    L_out_pad = n_l * l_tile
    L_pad = L_out_pad + K - 1
    tail_len = L_out - (n_l - 1) * l_tile
    halo_w = max(K - 1, 1)

    # Pre-cast to compute_dtype once in the wrapper (halves x/weight DMA bytes and VMEM,
    # removes per-step VPU casts); the cast is folded into the pad copy.
    x_pad = jnp.pad(x.astype(compute_dtype), ((0, 0), (0, 0), (0, L_pad - L)))

    args = [x_pad]
    in_specs = [pl.BlockSpec((1, C_in, l_tile), lambda n, l: (n, 0, l))]

    if K > 1:
        # Halo sidecar: first K-1 input columns of the *next* tile for every tile, built
        # from K-1 strided slices (no gather); extra HBM traffic is only (K-1)/l_tile of x.
        cols = [jax.lax.slice(x_pad, (0, 0, l_tile + j),
                              (N, C_in, n_l * l_tile + j + 1), (1, 1, l_tile))
                for j in range(halo_w)]
        halo = jnp.transpose(jnp.stack(cols, axis=-1), (0, 2, 1, 3))  # (N, n_l, C_in, K-1)
        args.append(halo)
        in_specs.append(pl.BlockSpec((1, 1, C_in, halo_w), lambda n, l: (n, l, 0, 0)))

    # Grid-constant weight / bias (Mosaic's pipeline does not re-fetch constant blocks).
    if K == 1:
        w_in = weight[:, :, 0].astype(compute_dtype)                       # (C_out, C_in)
        w_spec = pl.BlockSpec((C_out, C_in), lambda n, l: (0, 0))
    elif use_im2col:
        # column order (k, c_in) matches the in-kernel im2col stacking
        w_in = jnp.transpose(weight, (0, 2, 1)).reshape(C_out, K * C_in)
        w_in = w_in.astype(compute_dtype)
        w_spec = pl.BlockSpec((C_out, K * C_in), lambda n, l: (0, 0))
    else:
        w_in = jnp.transpose(weight, (2, 0, 1)).astype(compute_dtype)      # (K, C_out, C_in)
        w_spec = pl.BlockSpec((K, C_out, C_in), lambda n, l: (0, 0, 0))
    b2 = bias.reshape(C_out, 1).astype(jnp.float32)
    args += [w_in, b2]
    in_specs += [w_spec, pl.BlockSpec((C_out, 1), lambda n, l: (0, 0))]

    out_shapes = [jax.ShapeDtypeStruct((N, C_out, L_out_pad), inter_dtype)]
    out_specs = [pl.BlockSpec((1, C_out, l_tile), lambda n, l: (n, 0, l))]
    if apply_norm:
        out_shapes.append(jax.ShapeDtypeStruct((N, n_l, C_out, 2), jnp.float32))
        out_specs.append(pl.BlockSpec((1, 1, C_out, 2), lambda n, l: (n, l, 0, 0)))

    scratch_shapes = []
    if has_win:
        scratch_shapes.append(pltpu.VMEM((C_in, l_tile + _LANE), compute_dtype))

    kernel = functools.partial(
        _conv1d_kernel, K=K, l_tile=l_tile, halo_w=halo_w, tail_len=tail_len,
        use_im2col=use_im2col, apply_norm=apply_norm, has_win=has_win)

    flops = 2 * N * C_out * C_in * K * L_out
    bytes_accessed = (in_b * (x.size + w_in.size) + 4 * bias.size
                      + inter_b * N * C_out * L_out)
    vmem_need = _conv_vmem_bytes(C_in, C_out, K, l_tile, in_b, inter_b,
                                 use_im2col, apply_norm)

    result = pl.pallas_call(
        kernel,
        out_shape=tuple(out_shapes),
        grid_spec=pltpu.PrefetchScalarGridSpec(
            num_scalar_prefetch=0,
            grid=(N, n_l),                        # batch x L tiles, both parallel
            in_specs=in_specs,
            out_specs=out_specs,
            scratch_shapes=tuple(scratch_shapes)),
        compiler_params=pltpu.CompilerParams(
            dimension_semantics=("parallel", "parallel"),
            vmem_limit_bytes=_vmem_limit_bytes(vmem_need)),
        cost_estimate=pl.CostEstimate(flops=flops, transcendentals=0,
                                      bytes_accessed=bytes_accessed),
    )(*args)

    if not apply_norm:
        # TODO(synk): chained encodec layers could keep the lane-padded layout to avoid
        #             this trailing slice copy.
        return result[0][:, :, :L_out]

    y, stats = result[0], result[1]

    # GroupNorm finalize on a tiny array: fold group mean/rstd and the per-channel
    # affine into one per-(sample, channel) scale/shift.
    # TODO(synk): single-pass E[x^2]-E[x]^2 can lose precision vs two-pass for very long
    #             sequences / large channel means (use Welford if that matters).
    cg = C_out // groups
    cnt = float(cg * L_out)
    g_stats = stats.sum(axis=1).reshape(N, groups, cg, 2).sum(axis=2)   # (N, groups, 2)
    mu = g_stats[..., 0] / cnt
    var = g_stats[..., 1] / cnt - mu * mu                               # biased variance
    rstd = jax.lax.rsqrt(var + eps)
    gamma_g = gamma.reshape(1, groups, cg)
    beta_g = beta.reshape(1, groups, cg)
    a = (rstd[..., None] * gamma_g).reshape(N, C_out, 1)
    b = (beta_g - mu[..., None] * rstd[..., None] * gamma_g).reshape(N, C_out, 1)

    # Finalize pass is purely HBM-bound: use a larger lane-dense tile when possible.
    aff_l = l_tile
    for f in (4, 2):
        cand = l_tile * f
        if (n_l % f == 0 and cand <= 4096 and
                2 * C_out * cand * (inter_b + out_b) + 8 * C_out * 4 <= _VMEM_BUDGET):
            aff_l = cand
            break
    n_aff = L_out_pad // aff_l
    aff_need = 2 * C_out * aff_l * (inter_b + out_b) + 8 * C_out * 4

    # TODO(synk): under jit with a dead intermediate, input_output_aliases={0: 0} (when
    #             inter_dtype == out dtype) would let this pass reuse y's HBM buffer.
    out = pl.pallas_call(
        _affine_kernel,
        out_shape=jax.ShapeDtypeStruct((N, C_out, L_out_pad), out_dtype),
        grid_spec=pltpu.PrefetchScalarGridSpec(
            num_scalar_prefetch=0,
            grid=(N, n_aff),
            in_specs=[
                pl.BlockSpec((1, C_out, aff_l), lambda n, l: (n, 0, l)),
                pl.BlockSpec((1, C_out, 1), lambda n, l: (n, 0, 0)),
                pl.BlockSpec((1, C_out, 1), lambda n, l: (n, 0, 0)),
            ],
            out_specs=pl.BlockSpec((1, C_out, aff_l), lambda n, l: (n, 0, l))),
        compiler_params=pltpu.CompilerParams(
            dimension_semantics=("parallel", "parallel"),
            vmem_limit_bytes=_vmem_limit_bytes(aff_need)),
    )(y, a, b)

    return out[:, :, :L_out]


# ----------------------- pure-JAX reference for verification -----------------------
def ref_conv1d(x, w, b):
    out = jax.lax.conv_general_dilated(
        x, w, window_strides=(1,), padding='VALID',
        dimension_numbers=('NCH', 'OIH', 'NCH'))
    return out + b[None, :, None]


def ref_group_norm(y, gamma, beta, groups, eps):
    N, C, L = y.shape
    yr = y.reshape(N, groups, (C // groups) * L)
    mu = yr.mean(-1, keepdims=True)
    var = ((yr - mu) ** 2).mean(-1, keepdims=True)
    yn = ((yr - mu) / jnp.sqrt(var + eps)).reshape(N, C, L)
    return yn * gamma[None, :, None] + beta[None, :, None]


if __name__ == "__main__":
    key = jax.random.PRNGKey(0)
    k1, k2, k3, k4, k5, k6, k7, k8, k9, k10 = jax.random.split(key, 10)

    ok = True
    # f32 tolerances account for the TPU MXU's default bf16-pass f32 matmul precision
    # (errors ~0.3% rel); they still catch any layout / indexing / normalization bug.
    F32_TOL = dict(rtol=1e-2, atol=1e-2)
    BF16_TOL = dict(rtol=5e-2, atol=5e-2)

    # ---- configs 1-3: small shapes, shallow contraction (im2col path) ----
    N, C_in, C_out, L, K = 2, 4, 8, 16, 3
    gn_groups, eps = 2, 1e-5
    x = jax.random.normal(k1, (N, C_in, L), dtype=jnp.float32)
    weight_v = jax.random.normal(k2, (C_out, C_in, K), dtype=jnp.float32) * 0.3
    weight_g = 0.5 + 0.1 * jax.random.normal(k3, (C_out, 1, 1), dtype=jnp.float32)
    bias = jax.random.normal(k4, (C_out,), dtype=jnp.float32) * 0.1
    gamma = 1.0 + 0.1 * jax.random.normal(k5, (C_out,), dtype=jnp.float32)
    beta = 0.1 * jax.random.normal(k6, (C_out,), dtype=jnp.float32)

    # config 1: norm='weight_norm' (reparam folded into weight), f32 MXU operands
    w_eff = weight_norm_reparam(weight_v, weight_g)
    out_wn = jax.block_until_ready(
        norm_conv1d(x, w_eff, bias, gamma, beta, norm='weight_norm',
                    compute_dtype=jnp.float32))
    ref_wn = ref_conv1d(x, w_eff, bias)
    ok &= np.allclose(np.asarray(out_wn), np.asarray(ref_wn), **F32_TOL)

    # config 2: norm='time_group_norm' (conv + GroupNorm), f32 MXU operands
    out_gn = jax.block_until_ready(
        norm_conv1d(x, weight_v, bias, gamma, beta, norm='time_group_norm',
                    groups=gn_groups, eps=eps, compute_dtype=jnp.float32))
    ref_gn = ref_group_norm(ref_conv1d(x, weight_v, bias), gamma, beta, gn_groups, eps)
    ok &= np.allclose(np.asarray(out_gn), np.asarray(ref_gn), **F32_TOL)

    # config 3: bf16 MXU operands + bf16 group-norm intermediate, f32 accumulation
    out_bf = jax.block_until_ready(
        norm_conv1d(x, weight_v, bias, gamma, beta, norm='time_group_norm',
                    groups=gn_groups, eps=eps, compute_dtype=jnp.bfloat16))
    ok &= np.allclose(np.asarray(out_bf), np.asarray(ref_gn), **BF16_TOL)

    # ---- config 4: deeper contraction -> K-accumulating-dots path, multi-tile L ----
    N2, C_in2, C_out2, L2, K2, g2 = 1, 128, 64, 300, 3, 4
    x2 = jax.random.normal(k7, (N2, C_in2, L2), dtype=jnp.float32)
    w2 = jax.random.normal(k8, (C_out2, C_in2, K2), dtype=jnp.float32) * 0.1
    b2_ = jax.random.normal(k9, (C_out2,), dtype=jnp.float32) * 0.1
    gb = jax.random.normal(k10, (2, C_out2), dtype=jnp.float32)
    gamma2, beta2 = 1.0 + 0.1 * gb[0], 0.1 * gb[1]

    out_deep = jax.block_until_ready(
        norm_conv1d(x2, w2, b2_, gamma2, beta2, norm='time_group_norm',
                    groups=g2, eps=eps, l_tile=128, compute_dtype=jnp.bfloat16))
    ref_deep = ref_group_norm(ref_conv1d(x2, w2, b2_), gamma2, beta2, g2, eps)
    ok &= np.allclose(np.asarray(out_deep), np.asarray(ref_deep), **BF16_TOL)

    # ---- config 5: K == 1 (no halo path), weight_norm, f32 ----
    w1 = jax.random.normal(k8, (C_out, C_in, 1), dtype=jnp.float32) * 0.3
    out_k1 = jax.block_until_ready(
        norm_conv1d(x, w1, bias, gamma, beta, norm='weight_norm',
                    compute_dtype=jnp.float32))
    ref_k1 = ref_conv1d(x, w1, bias)
    ok &= np.allclose(np.asarray(out_k1), np.asarray(ref_k1), **F32_TOL)

    if not ok:
        raise SystemExit("mismatch vs reference")
    print("KERNEL_OK")
</pallas_src>

<mosaic_0001>
module attributes {stable_mosaic.version = 11 : i64} {
  func.func @_conv1d_kernel(%arg0: i32, %arg1: i32, %arg2: memref<1x4x128xf32, #tpu.memory_space<vmem>>, %arg3: memref<1x1x4x2xf32, #tpu.memory_space<vmem>>, %arg4: memref<8x12xf32, #tpu.memory_space<vmem>>, %arg5: memref<8x1xf32, #tpu.memory_space<vmem>>, %arg6: memref<1x8x128xf32, #tpu.memory_space<vmem>>) attributes {dimension_semantics = [#tpu.dimension_semantics<parallel>, #tpu.dimension_semantics<parallel>], iteration_bounds = array<i64: 2, 1>, scalar_prefetch = 0 : i64, scratch_operands = 0 : i64, tpu.core_type = #tpu.core_type<tc>, window_params = [{transform_indices = @transform_0, window_bounds = array<i64: 1, 4, 128>}, {transform_indices = @transform_1, window_bounds = array<i64: 1, 1, 4, 2>}, {pipeline_mode = #tpu.pipeline_mode<synchronous>, transform_indices = @transform_2, window_bounds = array<i64: 8, 12>}, {pipeline_mode = #tpu.pipeline_mode<synchronous>, transform_indices = @transform_3, window_bounds = array<i64: 8, 1>}, {transform_indices = @transform_4, window_bounds = array<i64: 1, 8, 128>}]} {
    %c0 = arith.constant 0 : index
    %c0_0 = arith.constant 0 : index
    %c0_1 = arith.constant 0 : index
    %0 = vector.load %arg2[%c0, %c0_0, %c0_1] : memref<1x4x128xf32, #tpu.memory_space<vmem>>, vector<1x4x128xf32>
    %1 = vector.shape_cast %0 : vector<1x4x128xf32> to vector<4x128xf32>
    %c0_2 = arith.constant 0 : index
    %c0_3 = arith.constant 0 : index
    %c0_4 = arith.constant 0 : index
    %c0_5 = arith.constant 0 : index
    %2 = vector.load %arg3[%c0_2, %c0_3, %c0_4, %c0_5] : memref<1x1x4x2xf32, #tpu.memory_space<vmem>>, vector<1x1x4x2xf32>
    %3 = vector.shape_cast %2 : vector<1x1x4x2xf32> to vector<4x2xf32>
    %4 = tpu.concatenate %1, %3 in 1 : vector<4x128xf32>, vector<4x2xf32> -> vector<4x130xf32>
    %5 = vector.extract_strided_slice %4 {offsets = [0, 0], sizes = [4, 128], strides = [1, 1]} : vector<4x130xf32> to vector<4x128xf32>
    %6 = vector.extract_strided_slice %4 {offsets = [0, 1], sizes = [4, 128], strides = [1, 1]} : vector<4x130xf32> to vector<4x128xf32>
    %7 = vector.extract_strided_slice %4 {offsets = [0, 2], sizes = [4, 128], strides = [1, 1]} : vector<4x130xf32> to vector<4x128xf32>
    %8 = tpu.concatenate %5, %6, %7 in 0 : vector<4x128xf32>, vector<4x128xf32>, vector<4x128xf32> -> vector<12x128xf32>
    %c0_6 = arith.constant 0 : index
    %c0_7 = arith.constant 0 : index
    %9 = vector.load %arg4[%c0_6, %c0_7] : memref<8x12xf32, #tpu.memory_space<vmem>>, vector<8x12xf32>
    %cst = arith.constant dense<0.000000e+00> : vector<8x128xf32>
    %10 = tpu.matmul %9, %8, %cst {dimension_numbers = #tpu.dot_dimension_numbers<[1], [0], [0], [1], [0, 0, 1, 1], [], []>} : vector<8x12xf32>, vector<12x128xf32>, vector<8x128xf32> -> vector<8x128xf32>
    %c0_8 = arith.constant 0 : index
    %c0_9 = arith.constant 0 : index
    %11 = vector.load %arg5[%c0_8, %c0_9] : memref<8x1xf32, #tpu.memory_space<vmem>>, vector<8x1xf32>
    %12 = vector.broadcast %11 : vector<8x1xf32> to vector<8x128xf32>
    %13 = arith.addf %10, %12 : vector<8x128xf32>
    %c0_10 = arith.constant 0 : index
    %c0_11 = arith.constant 0 : index
    %c0_12 = arith.constant 0 : index
    %14 = vector.load %arg6[%c0_10, %c0_11, %c0_12] : memref<1x8x128xf32, #tpu.memory_space<vmem>>, vector<1x8x128xf32>
    %15 = vector.shape_cast %14 : vector<1x8x128xf32> to vector<8x128xf32>
    %16 = vector.shape_cast %13 : vector<8x128xf32> to vector<1x8x128xf32>
    tpu.vector_store %arg6[%c0_10, %c0_11, %c0_12], %16 {strides = array<i32>} : memref<1x8x128xf32, #tpu.memory_space<vmem>>, vector<1x8x128xf32>,
    return
  }
  func.func @transform_0(%arg0: i32, %arg1: i32) -> (i32, i32, i32) {
    %c0_i32 = arith.constant 0 : i32
    %c0_i32_0 = arith.constant 0 : i32
    return %arg0, %c0_i32, %arg1 : i32, i32, i32
  }
  func.func @transform_1(%arg0: i32, %arg1: i32) -> (i32, i32, i32, i32) {
    %c0_i32 = arith.constant 0 : i32
    %c0_i32_0 = arith.constant 0 : i32
    %c0_i32_1 = arith.constant 0 : i32
    return %arg0, %arg1, %c0_i32, %c0_i32_0 : i32, i32, i32, i32
  }
  func.func @transform_2(%arg0: i32, %arg1: i32) -> (i32, i32) {
    %c0_i32 = arith.constant 0 : i32
    %c0_i32_0 = arith.constant 0 : i32
    %c0_i32_1 = arith.constant 0 : i32
    return %c0_i32, %c0_i32_0 : i32, i32
  }
  func.func @transform_3(%arg0: i32, %arg1: i32) -> (i32, i32) {
    %c0_i32 = arith.constant 0 : i32
    %c0_i32_0 = arith.constant 0 : i32
    %c0_i32_1 = arith.constant 0 : i32
    return %c0_i32, %c0_i32_0 : i32, i32
  }
  func.func @transform_4(%arg0: i32, %arg1: i32) -> (i32, i32, i32) {
    %c0_i32 = arith.constant 0 : i32
    %c0_i32_0 = arith.constant 0 : i32
    return %arg0, %c0_i32, %arg1 : i32, i32, i32
  }
}

</mosaic_0001>

<llo_original>
// kernel: tpu_custom_call.1
$region0: #{tpu_custom_call.1}
  #allocation0 [shape = 'u32[]', space=smem, size = 0x4, offset = 0x4, fixed_abs, tag = 'smem constant byte address 0x4 - core index']
  #allocation1 [shape = 'u32[144,128]{1,0:T(1,128)}', space=vmem, size = 0x12000, scoped, tag = 'internal scratch']
  %s0 = inlined_call_operand.vmem [shape: f32[2,4,130], index: 0, kind: input, shape index: {}]
  %s1 = inlined_call_operand.vmem [shape: f32[2,1,4,2], index: 1, kind: input, shape index: {}]
  %s2 = inlined_call_operand.vmem [shape: f32[8,12], index: 2, kind: input, shape index: {}]
  %s3 = inlined_call_operand.vmem [shape: f32[8,1], index: 3, kind: input, shape index: {}]
  %s4 = inlined_call_operand.hbm [shape: f32[2,8,128], index: 4, kind: output, shape index: {}]
  %s5 = sld [smem:[#allocation0]]
  $region49: #{tpu_custom_call.1} parent=0
    _
  %s7 = ssub.s32 1, %s5
  %s8 = scalar_select 0, %s7, %s5
  $region1: #{tpu_custom_call.1} parent=0
    #allocation2 [shape = 'u8[8192]{0}', space=vmem, size = 0x2000, scoped, tag = 'output window, operand 0']
    #allocation3 [shape = 's32[2]{0}', space=sflag, size = 0x8, scoped, tag = 'scoped memory for tpu_custom_call.1']
    %9 = vsyncpa [#allocation3], 0
    %s10 = scalar_lea.sflag [#allocation3], 1
    %11 = vsyncpa %s10, 0
    loop: start=0, step=1, limit=4
    $region2: #{tpu_custom_call.1} parent=1 // loop_pre_header
      _
    $region3: #{tpu_custom_call.1} parent=1 // loop_header
      %s13 = sphi 0, %s17
      %p14 = scmp.ge.s32.totalorder %s13, 4
      %s20 = sphi 0, %s32
      %s21 = sphi 0, %s28
      %s22 = sphi 0, %s20
      %s23 = sphi 0, %s21
      %s24 = sphi 0, %s22
      %s25 = sphi 0, %s23
      %s37 = sphi 0, %s39
      %s40 = sphi 0, %s37
      %s41 = sphi 0, %s40
      %s57 = sphi 0, %s41
      %s65 = sphi 0, %s67
      %s68 = sphi 0, %s65
      %s69 = sphi 0, %s68
      %s85 = sphi 0, %s69
      %s89 = sphi 0, %s89
      %s91 = sphi 0, %s89
      %s92 = sphi 0, %s91
      %s106 = sphi 0, %s92
      %s110 = sphi 0, %s110
      %s112 = sphi 0, %s110
      %s113 = sphi 0, %s112
      %s127 = sphi 0, %s113
      %s135 = sphi 0, %s137
      %s138 = sphi 0, %s135
      %s139 = sphi 0, %s138
      %s155 = sphi 0, %s139
    $region4: #{tpu_custom_call.1} parent=1 // loop_header_branch
      %16 = sbr.rel (%p14) target = $region8
    $region5: #{tpu_custom_call.1} parent=1 // loop_body
      %s18 = ssub.s32 %s13, 1
      %s19 = ssub.s32 %s13, 2
      %s26 = sadd.s32 1, %s21
      %p27 = scmp.ge.s32.totalorder %s26, 1
      %s28 = scalar_select %p27, 0, %s26
      %s29 = sadd.s32 1, %s20
      %s30 = scalar_select %p27, %s29, %s20
      %p31 = scmp.ge.s32.totalorder %s30, 2
      %s32 = scalar_select %p31, 0, %s30
      %s33 = ssub.s32 %s20, %s32
      %s34 = ssub.s32 %s21, %s28
      %s35 = sor.u32 %s33, %s34
      %p36 = scmp.eq.s32.totalorder %s35, 0
      %s38 = sadd.s32 %s37, 1
      %s39 = scalar_select %p36, %s37, %s38
      %p42 = pneg %p36
      %p43 = scmp.eq.s32.totalorder %s13, 1
      %p44 = por %p42, %p43
      %p45 = scmp.ne.s32.totalorder %s37, %s40
      %p46 = scmp.eq.s32.totalorder %s13, 0
      %p47 = por %p45, %p46
      %p48 = scmp.ne.s32.totalorder %s37, %s40
      %p49 = scmp.eq.s32.totalorder %s18, 1
      %p50 = por %p48, %p49
      %p51 = scmp.ne.s32.totalorder %s40, %s41
      %p52 = scmp.eq.s32.totalorder %s18, 0
      %p53 = por %p51, %p52
      %p54 = scmp.ne.s32.totalorder %s40, %s41
      %p55 = scmp.eq.s32.totalorder %s19, 1
      %p56 = por %p54, %p55
      %p58 = scmp.ne.s32.totalorder %s41, %s57
      %p59 = scmp.eq.s32.totalorder %s19, 0
      %p60 = por %p58, %p59
      %s61 = ssub.s32 %s20, %s32
      %s62 = ssub.s32 %s21, %s28
      %s63 = sor.u32 %s61, %s62
      %p64 = scmp.eq.s32.totalorder %s63, 0
      %s66 = sadd.s32 %s65, 1
      %s67 = scalar_select %p64, %s65, %s66
      %p70 = pneg %p64
      %p71 = scmp.eq.s32.totalorder %s13, 1
      %p72 = por %p70, %p71
      %p73 = scmp.ne.s32.totalorder %s65, %s68
      %p74 = scmp.eq.s32.totalorder %s13, 0
      %p75 = por %p73, %p74
      %p76 = scmp.ne.s32.totalorder %s65, %s68
      %p77 = scmp.eq.s32.totalorder %s18, 1
      %p78 = por %p76, %p77
      %p79 = scmp.ne.s32.totalorder %s68, %s69
      %p80 = scmp.eq.s32.totalorder %s18, 0
      %p81 = por %p79, %p80
      %p82 = scmp.ne.s32.totalorder %s68, %s69
      %p83 = scmp.eq.s32.totalorder %s19, 1
      %p84 = por %p82, %p83
      %p86 = scmp.ne.s32.totalorder %s69, %s85
      %p87 = scmp.eq.s32.totalorder %s19, 0
      %p88 = por %p86, %p87
      %s90 = sadd.s32 %s89, 1
      %p93 = scmp.eq.s32.totalorder %s13, 1
      %p94 = scmp.ne.s32.totalorder %s89, %s91
      %p95 = scmp.eq.s32.totalorder %s13, 0
      %p96 = por %p94, %p95
      %p97 = scmp.ne.s32.totalorder %s89, %s91
      %p98 = scmp.eq.s32.totalorder %s18, 1
      %p99 = por %p97, %p98
      %p100 = scmp.ne.s32.totalorder %s91, %s92
      %p101 = scmp.eq.s32.totalorder %s18, 0
      %p102 = por %p100, %p101
      %p103 = scmp.ne.s32.totalorder %s91, %s92
      %p104 = scmp.eq.s32.totalorder %s19, 1
      %p105 = por %p103, %p104
      %p107 = scmp.ne.s32.totalorder %s92, %s106
      %p108 = scmp.eq.s32.totalorder %s19, 0
      %p109 = por %p107, %p108
      %s111 = sadd.s32 %s110, 1
      %p114 = scmp.eq.s32.totalorder %s13, 1
      %p115 = scmp.ne.s32.totalorder %s110, %s112
      %p116 = scmp.eq.s32.totalorder %s13, 0
      %p117 = por %p115, %p116
      %p118 = scmp.ne.s32.totalorder %s110, %s112
      %p119 = scmp.eq.s32.totalorder %s18, 1
      %p120 = por %p118, %p119
      %p121 = scmp.ne.s32.totalorder %s112, %s113
      %p122 = scmp.eq.s32.totalorder %s18, 0
      %p123 = por %p121, %p122
      %p124 = scmp.ne.s32.totalorder %s112, %s113
      %p125 = scmp.eq.s32.totalorder %s19, 1
      %p126 = por %p124, %p125
      %p128 = scmp.ne.s32.totalorder %s113, %s127
      %p129 = scmp.eq.s32.totalorder %s19, 0
      %p130 = por %p128, %p129
      %s131 = ssub.s32 %s20, %s32
      %s132 = ssub.s32 %s21, %s28
      %s133 = sor.u32 %s131, %s132
      %p134 = scmp.eq.s32.totalorder %s133, 0
      %s136 = sadd.s32 %s135, 1
      %s137 = scalar_select %p134, %s135, %s136
      %p140 = pneg %p134
      %p141 = scmp.eq.s32.totalorder %s13, 1
      %p142 = por %p140, %p141
      %p143 = scmp.ne.s32.totalorder %s135, %s138
      %p144 = scmp.eq.s32.totalorder %s13, 0
      %p145 = por %p143, %p144
      %p146 = scmp.ne.s32.totalorder %s135, %s138
      %p147 = scmp.eq.s32.totalorder %s18, 1
      %p148 = por %p146, %p147
      %p149 = scmp.ne.s32.totalorder %s138, %s139
      %p150 = scmp.eq.s32.totalorder %s18, 0
      %p151 = por %p149, %p150
      %p152 = scmp.ne.s32.totalorder %s138, %s139
      %p153 = scmp.eq.s32.totalorder %s19, 1
      %p154 = por %p152, %p153
      %p156 = scmp.ne.s32.totalorder %s139, %s155
      %p157 = scmp.eq.s32.totalorder %s19, 0
      %p158 = por %p156, %p157
      %p159 = scmp.le.s32.totalorder 1, %s13
      %p160 = scmp.lt.s32.totalorder %s13, 3
      %p161 = pnand %p159, %p160
      %p162 = pneg %p161
      // Predicated region
      $region9: #{tpu_custom_call.1} parent=5 // pred_check
        _
      $region10: #{tpu_custom_call.1} parent=5 // pred_check_branch
        %164 = sbr.rel (%p161) target = $region12
      $region11: #{tpu_custom_call.1} parent=5 // pred_region
        %s165 = ssub.s32 %s13, 1
        // Predicated region
        $region13: #{tpu_custom_call.1} parent=11 // pred_check
          %p166 = pneg %p102
        $region14: #{tpu_custom_call.1} parent=11 // pred_check_branch
          %168 = sbr.rel (%p166) target = $region16
        $region15: #{tpu_custom_call.1} parent=11 // pred_region
          _
        $region16: #{tpu_custom_call.1} parent=11 // pred_fallthru
          _
        // Predicated region
        $region17: #{tpu_custom_call.1} parent=11 // pred_check
          %p169 = pneg %p123
        $region18: #{tpu_custom_call.1} parent=11 // pred_check_branch
          %171 = sbr.rel (%p169) target = $region20
        $region19: #{tpu_custom_call.1} parent=11 // pred_region
          _
        $region20: #{tpu_custom_call.1} parent=11 // pred_fallthru
          _
      $region12: #{tpu_custom_call.1} parent=5 // pred_fallthru
        _
      %p172 = scmp.lt.s32.totalorder %s13, 2
      // Predicated region
      $region21: #{tpu_custom_call.1} parent=5 // pred_check
        %p173 = pneg %p172
      $region22: #{tpu_custom_call.1} parent=5 // pred_check_branch
        %175 = sbr.rel (%p173) target = $region24
      $region23: #{tpu_custom_call.1} parent=5 // pred_region
        // Predicated region
        $region25: #{tpu_custom_call.1} parent=23 // pred_check
          %p176 = pneg %p47
        $region26: #{tpu_custom_call.1} parent=23 // pred_check_branch
          %178 = sbr.rel (%p176) target = $region28
        $region27: #{tpu_custom_call.1} parent=23 // pred_region
          %p179 = scmp.lt.s32.totalorder %s20, 1
          %s180 = scalar_select %p179, %s20, 1
          %p181 = scmp.lt.s32.totalorder %s21, 1
          %s182 = scalar_select %p181, %s21, 1
          %s183 = smul.addr %s180, 2
          %s184 = sadd.s32 %s182, %s183
          %s185 = smul.addr %s184, 4
          %s186 = scalar_lea.vmem %s0, %s185
        $region28: #{tpu_custom_call.1} parent=23 // pred_fallthru
          _
        // Predicated region
        $region29: #{tpu_custom_call.1} parent=23 // pred_check
          %p187 = pneg %p75
        $region30: #{tpu_custom_call.1} parent=23 // pred_check_branch
          %189 = sbr.rel (%p187) target = $region32
        $region31: #{tpu_custom_call.1} parent=23 // pred_region
          %p190 = scmp.lt.s32.totalorder %s20, 1
          %s191 = scalar_select %p190, %s20, 1
          %p192 = scmp.lt.s32.totalorder %s21, 0
          %s193 = scalar_select %p192, %s21, 0
          %s194 = sadd.s32 %s193, %s191
          %s195 = smul.addr %s194, 4
          %s196 = scalar_lea.vmem %s1, %s195
        $region32: #{tpu_custom_call.1} parent=23 // pred_fallthru
          _
      $region24: #{tpu_custom_call.1} parent=5 // pred_fallthru
        _
      %p197 = scmp.le.s32.totalorder 1, %s13
      %p198 = scmp.lt.s32.totalorder %s13, 3
      %p199 = pnand %p197, %p198
      %p200 = pneg %p199
      // Predicated region
      $region33: #{tpu_custom_call.1} parent=5 // pred_check
        _
      $region34: #{tpu_custom_call.1} parent=5 // pred_check_branch
        %202 = sbr.rel (%p199) target = $region36
      $region35: #{tpu_custom_call.1} parent=5 // pred_region
        %s203 = ssub.s32 %s13, 1
        %p204 = scmp.lt.s32.totalorder %s22, 1
        %s205 = scalar_select %p204, %s22, 1
        %p206 = scmp.lt.s32.totalorder %s23, 1
        %s207 = scalar_select %p206, %s23, 1
        %s208 = smul.addr %s205, 2
        %s209 = sadd.s32 %s207, %s208
        %s210 = smul.addr %s209, 4
        %s211 = scalar_lea.vmem %s0, %s210
        %p212 = pneg %p53
        %p213 = pneg %p50
        %p214 = scmp.lt.s32.totalorder %s22, 1
        %s215 = scalar_select %p214, %s22, 1
        %p216 = scmp.lt.s32.totalorder %s23, 0
        %s217 = scalar_select %p216, %s23, 0
        %s218 = sadd.s32 %s217, %s215
        %s219 = smul.addr %s218, 4
        %s220 = scalar_lea.vmem %s1, %s219
        %p221 = pneg %p81
        %p222 = pneg %p78
        %p223 = pneg %p102
        %p224 = pneg %p99
        %p225 = pneg %p123
        %p226 = pneg %p120
        %p227 = pneg %p151
        %p228 = pneg %p148
        %s229 = sand.u32 %s138, 1
        %s230 = scalar_lea.sflag [#allocation3], %s229
        %s231 = sand.u32 %s138, 1
        %s232 = smul.addr %s231, 8
        %s233 = scalar_lea.vmem [#allocation2], %s232
        %p234 = scmp.lt.s32.totalorder %s22, 1
        %s235 = scalar_select %p234, %s22, 1
        %p236 = scmp.lt.s32.totalorder %s23, 1
        %s237 = scalar_select %p236, %s23, 1
        %s238 = smul.addr %s235, 2
        %s239 = sadd.s32 %s237, %s238
        %s240 = smul.addr %s239, 4
        %s241 = scalar_lea.vmem %s0, %s240
        %p242 = scmp.lt.s32.totalorder %s22, 1
        %s243 = scalar_select %p242, %s22, 1
        %p244 = scmp.lt.s32.totalorder %s23, 0
        %s245 = scalar_select %p244, %s23, 0
        %s246 = sadd.s32 %s245, %s243
        %s247 = smul.addr %s246, 4
        %s248 = scalar_lea.vmem %s1, %s247
        %v249 = vld [vmem:[%s241] sm:$0xf]
        %v250 = vld [vmem:[%s248] sm:$0xf]
        %v253 = vrot.slane %v249, 4
        %v254 = vrot.slane %v250, 4
        %255 = vrot.lane.b32.xlu0 %v253, 127
        %v256 = vpop.permute.xlu0 %255
        %257 = vrot.lane.b32.xlu0 %v254, 127
        %v258 = vpop.permute.xlu0 %257
        %vm259 = vcmask 1039360
        %v260 = vsel %vm259, %v256, %v258
        %262 = vrot.lane.b32.xlu0 %v249, 126
        %v263 = vpop.permute.xlu0 %262
        %264 = vrot.lane.b32.xlu0 %v250, 126
        %v265 = vpop.permute.xlu0 %264
        %vm266 = vcmask 1031168
        %v267 = vsel %vm266, %v263, %v265
        %vm268 = vcmask 1043456
        %v269 = vsel %vm268, %v249, %v260
        %v270 = vld [vmem:[%s2] sm:$0xff]
        %v271 = vld [vmem:[%s3] sm:$0xff]
        %273 = vset.pattern.permute.xlu0 0
        %274 = vperm.xlu0 %273, %v271
        %v275 = vpop.permute.xlu0 %274
        %vm277 = vcmask 97280
        %v279 = vsel %vm277, %v270, 0
        %v281 = vsel %vm268, %v267, 0
        %283 = vmatprep.subr.mxu0 0.0
        %284 = vmatpush1.msra.mxu0 0.0
        %285 = vmatprep.subr.mxu0 0.0
        %286 = vmatpush1.msra.mxu0 0.0
        %287 = vmatprep.subr.mxu0 0.0
        %288 = vmatpush1.msra.mxu0 0.0
        %289 = vmatprep.subr.mxu0 0.0
        %290 = vmatpush1.msra.mxu0 0.0
        %291 = vmatprep.subr.mxu0 0.0
        %292 = vmatpush1.msra.mxu0 0.0
        %293 = vmatprep.subr.mxu0 0.0
        %294 = vmatpush1.msra.mxu0 0.0
        %295 = vmatprep.subr.mxu0 0.0
        %296 = vmatpush1.msra.mxu0 0.0
        %297 = vmatprep.subr.mxu0 0.0
        %298 = vmatpush1.msra.mxu0 0.0
        %299 = vmatprep.subr.mxu0 0.0
        %300 = vmatpush1.msra.mxu0 0.0
        %301 = vmatprep.subr.mxu0 0.0
        %302 = vmatpush1.msra.mxu0 0.0
        %303 = vmatprep.subr.mxu0 0.0
        %304 = vmatpush1.msra.mxu0 0.0
        %305 = vmatprep.subr.mxu0 0.0
        %306 = vmatpush1.msra.mxu0 0.0
        %307 = vmatprep.subr.mxu0 0.0
        %308 = vmatpush1.msra.mxu0 0.0
        %309 = vmatprep.subr.mxu0 0.0
        %310 = vmatpush1.msra.mxu0 0.0
        %311 = vmatprep.subr.mxu0 0.0
        %312 = vmatpush1.msra.mxu0 %v281
        %313 = vmatprep.subr.mxu0 0.0
        %314 = vmatpush1.msra.mxu0 %v269
        %315 = vmatprep.subr.mxu0 0.0
        %316 = vmatpush2.msra.mxu0 0.0
        %317 = vmatprep.subr.mxu0 0.0
        %318 = vmatpush2.msra.mxu0 0.0
        %319 = vmatprep.subr.mxu0 0.0
        %320 = vmatpush2.msra.mxu0 0.0
        %321 = vmatprep.subr.mxu0 0.0
        %322 = vmatpush2.msra.mxu0 0.0
        %323 = vmatprep.subr.mxu0 0.0
        %324 = vmatpush2.msra.mxu0 0.0
        %325 = vmatprep.subr.mxu0 0.0
        %326 = vmatpush2.msra.mxu0 0.0
        %327 = vmatprep.subr.mxu0 0.0
        %328 = vmatpush2.msra.mxu0 0.0
        %329 = vmatprep.subr.mxu0 0.0
        %330 = vmatpush2.msra.mxu0 0.0
        %331 = vmatprep.subr.mxu0 0.0
        %332 = vmatpush2.msra.mxu0 0.0
        %333 = vmatprep.subr.mxu0 0.0
        %334 = vmatpush2.msra.mxu0 0.0
        %335 = vmatprep.subr.mxu0 0.0
        %336 = vmatpush2.msra.mxu0 0.0
        %337 = vmatprep.subr.mxu0 0.0
        %338 = vmatpush2.msra.mxu0 0.0
        %339 = vmatprep.subr.mxu0 0.0
        %340 = vmatpush2.msra.mxu0 0.0
        %341 = vmatprep.subr.mxu0 0.0
        %342 = vmatpush2.msra.mxu0 0.0
        %343 = vmatprep.subr.mxu0 0.0
        %344 = vmatpush2.msra.mxu0 0.0
        %345 = vmatprep.subr.mxu0 0.0
        %346 = vmatpush2.msra.mxu0 0.0
        %347 = vmatprep.mubr.f32.mxu0 0.0
        %348 = vmatmul.mubr.f32.gmra.mxu0 %v279
        %v349 = vpop.f32.mrf.mxu0
        %v350 = vadd.f32 %v275, %v349
        %v351 = vpop.f32.mrf.mxu0
        %352 = vdwg.mxu0
        %353 = vst [vmem:[%s233] sm:$0xff] %v350
        %s354 = sand.u32 %s138, 1
        %s355 = scalar_lea.sflag [#allocation3], %s354
        %s356 = sand.u32 %s138, 1
        %s357 = smul.addr %s356, 8
        %s358 = scalar_lea.vmem [#allocation2], %s357
        // Predicated region
        $region37: #{tpu_custom_call.1} parent=35 // pred_check
          %p359 = pneg %p148
        $region38: #{tpu_custom_call.1} parent=35 // pred_check_branch
          %361 = sbr.rel (%p359) target = $region40
        $region39: #{tpu_custom_call.1} parent=35 // pred_region
          %s363 = ssub.s32 128, 128
          %364 = vsyncadd %s355, %s363
          %s365 = sadd.s32 %s23, %s22
          %s366 = smul.addr %s365, 128
          %s367 = scalar_lea.hbm %s4, %s366
          %s369 = sshll.u32 %s358, 4
          %s370 = int_to_ptr.vmem [resolvable:$true] %s369
          %372 = dma.vmem_to_hbm [thread:$0]  %s370, 128, %s367, %s355
        $region40: #{tpu_custom_call.1} parent=35 // pred_fallthru
          _
      $region36: #{tpu_custom_call.1} parent=5 // pred_fallthru
        _
      %p373 = scmp.le.s32.totalorder 2, %s13
      // Predicated region
      $region41: #{tpu_custom_call.1} parent=5 // pred_check
        %p374 = pneg %p373
      $region42: #{tpu_custom_call.1} parent=5 // pred_check_branch
        %376 = sbr.rel (%p374) target = $region44
      $region43: #{tpu_custom_call.1} parent=5 // pred_region
        %s377 = ssub.s32 %s13, 2
        // Predicated region
        $region45: #{tpu_custom_call.1} parent=43 // pred_check
          %p378 = pneg %p154
        $region46: #{tpu_custom_call.1} parent=43 // pred_check_branch
          %380 = sbr.rel (%p378) target = $region48
        $region47: #{tpu_custom_call.1} parent=43 // pred_region
          %s381 = sand.u32 %s139, 1
          %s382 = scalar_lea.sflag [#allocation3], %s381
          %s383 = sand.u32 %s139, 1
          %s384 = smul.addr %s383, 8
          %s385 = scalar_lea.vmem [#allocation2], %s384
          %386 = dma.done %s382, 128
        $region48: #{tpu_custom_call.1} parent=43 // pred_fallthru
          _
      $region44: #{tpu_custom_call.1} parent=5 // pred_fallthru
        _
    $region6: #{tpu_custom_call.1} parent=1 // loop_footer
      %s17 = sadd.s32 1, %s13
    $region7: #{tpu_custom_call.1} parent=1 // loop_footer_branch
      %12 = sbr.rel target = $region3
    $region8: #{tpu_custom_call.1} parent=1 // loop_exit
      _
    %387 = vsyncpa [#allocation3], 1
    %s388 = scalar_lea.sflag [#allocation3], 1
    %389 = vsyncpa %s388, 1

</llo_original>
